<compile_context>
chip_gen: v5e
topology: v5e:2x2
jax: 0.10.0
libtpu: 0.0.40
codegen_flags: <defaults>
</compile_context>

<pallas_src>
import math
import functools

import jax
import jax.numpy as jnp
from jax.experimental import pallas as pl
from jax.experimental.pallas import tpu as pltpu


# ----------------------------------------------------------------------------
# Hardware-aware configuration
# ----------------------------------------------------------------------------
def _vmem_budget_bytes():
    """Generation-aware scoped-VMEM budget (leave headroom for Mosaic scratch)."""
    cap = 64 * 1024 * 1024
    try:
        cap = int(pltpu.get_tpu_info().vmem_capacity_bytes)
    except Exception:
        pass  # conservative fallback (works on v7x's 64 MiB physical VMEM)
    return min(cap * 3 // 4, 112 * 1024 * 1024)


def _tile_targets(vmem_budget):
    if vmem_budget >= 80 * 1024 * 1024:   # v5e / v6e: 128 MiB physical VMEM
        return dict(ts=512, tq=512, tk=1024, tf=2048, tv=4096)
    return dict(ts=256, tq=256, tk=256, tf=1024, tv=2048)  # v7x: 64 MiB physical VMEM


@functools.lru_cache(maxsize=None)
def _single_buffer_supported():
    """Probe whether pipeline_mode=pl.Buffered(1) lowers on this jax/libtpu."""
    try:
        def _copy(x_ref, o_ref):
            o_ref[...] = x_ref[...]
        spec = pl.BlockSpec((8, 128), lambda i: (0, 0), pipeline_mode=pl.Buffered(1))
        out = pl.pallas_call(
            _copy,
            out_shape=jax.ShapeDtypeStruct((8, 128), jnp.float32),
            grid=(1,),
            in_specs=[spec],
            out_specs=pl.BlockSpec((8, 128), lambda i: (0, 0)),
        )(jnp.zeros((8, 128), jnp.float32))
        jax.block_until_ready(out)
        return True
    except Exception:
        return False


def _const_in_spec(shape, index_map):
    """BlockSpec for a grid-invariant (weight) operand.

    The block index is constant, so double-buffering it is pure VMEM waste;
    single-buffer it when the installed jax supports pipeline_mode.
    """
    if _single_buffer_supported():
        return pl.BlockSpec(shape, index_map, pipeline_mode=pl.Buffered(1))
    return pl.BlockSpec(shape, index_map)


# ----------------------------------------------------------------------------
# helpers
# ----------------------------------------------------------------------------
def _layernorm(x, gamma, beta, eps=1e-5):
    mu = jnp.mean(x, axis=-1, keepdims=True)
    var = jnp.mean((x - mu) ** 2, axis=-1, keepdims=True)
    return (x - mu) * jax.lax.rsqrt(var + eps) * gamma + beta


def _gelu(x):
    # TODO(synk): PyTorch nn.GELU defaults to exact erf; tanh approximation used (EUP path).
    return 0.5 * x * (1.0 + jnp.tanh(0.7978845608028654 * (x + 0.044715 * x * x * x)))


def _tile_sub(n, target):
    """Largest divisor of n that is <= target and a multiple of 8; else n (full dim is legal)."""
    for c in range(min(n, target), 0, -1):
        if n % c == 0 and (c % 8 == 0 or c == n):
            return c
    return n


def _tile_lane(n, target):
    """Largest divisor of n that is <= target and a multiple of 128; else n (full dim is legal)."""
    for c in range(min(n, target), 0, -1):
        if n % c == 0 and (c % 128 == 0 or c == n):
            return c
    return n


# ----------------------------------------------------------------------------
# Kernels
# ----------------------------------------------------------------------------
def qkv_proj_kernel(x_ref, g_ref, b_ref, wqkv_ref, bqkv_ref,
                    q_ref, k_ref, v_ref, *, n_heads):
    """LN1 + fused QKV projection for one (batch, seq-tile)."""
    x = x_ref[0].astype(jnp.float32)                       # (TS, D)
    xn = _layernorm(x, g_ref[...], b_ref[...])
    qkv = jnp.dot(xn.astype(jnp.bfloat16), wqkv_ref[...],
                  preferred_element_type=jnp.float32) + bqkv_ref[...]   # (TS, 3D) f32
    d_model = qkv.shape[-1] // 3
    d_head = d_model // n_heads
    # TODO(synk): for d_head < 128 these per-head stores are lane-masked; packing heads
    # so the last dim is >=128 would make them lane-dense.
    for h in range(n_heads):
        base = h * d_head
        q_ref[0, h] = qkv[:, base: base + d_head].astype(jnp.bfloat16)
        k_ref[0, h] = qkv[:, d_model + base: d_model + base + d_head].astype(jnp.bfloat16)
        v_ref[0, h] = qkv[:, 2 * d_model + base: 2 * d_model + base + d_head].astype(jnp.bfloat16)


def flash_attn_kernel(q_ref, k_ref, v_ref, o_ref, m_sc, l_sc, acc_sc, *, scale, tq, tk):
    """Per-head causal flash attention over KV tiles (grid: B, H, S/TQ, S/TK)."""
    qi = pl.program_id(2)
    ki = pl.program_id(3)
    nk = pl.num_programs(3)

    @pl.when(ki == 0)
    def _init():
        m_sc[...] = jnp.full(m_sc.shape, -jnp.inf, jnp.float32)
        l_sc[...] = jnp.zeros(l_sc.shape, jnp.float32)
        acc_sc[...] = jnp.zeros(acc_sc.shape, jnp.float32)

    def _scores():
        q = (q_ref[0, 0] * scale).astype(jnp.bfloat16)     # (TQ, Dh)
        return jax.lax.dot_general(q, k_ref[0, 0], (((1,), (1,)), ((), ())),
                                   preferred_element_type=jnp.float32)   # (TQ, TK)

    def _update(s):
        m_prev = m_sc[...]
        m_new = jnp.maximum(m_prev, jnp.max(s, axis=-1, keepdims=True))
        alpha = jnp.exp(m_prev - m_new)
        # TODO(synk): on v6e/v7x a bf16 exp path would double EUP throughput; kept f32
        # for v5e safety and numerics.
        p = jnp.exp(s - m_new)
        l_sc[...] = alpha * l_sc[...] + jnp.sum(p, axis=-1, keepdims=True)
        acc_sc[...] = alpha * acc_sc[...] + jnp.dot(
            p.astype(jnp.bfloat16), v_ref[0, 0], preferred_element_type=jnp.float32)
        m_sc[...] = m_new

    is_diag = jnp.logical_and(ki * tk < (qi + 1) * tq, (ki + 1) * tk > qi * tq)
    is_full = (ki + 1) * tk <= qi * tq          # strictly below the diagonal
    # (fully-masked tiles fall into neither branch: no compute, and their K/V DMA is
    #  already skipped by the clamped index_map)

    @pl.when(is_diag)
    def _diag():                                            # mask only where needed
        s = _scores()
        rows = qi * tq + jax.lax.broadcasted_iota(jnp.int32, (tq, tk), 0)
        cols = ki * tk + jax.lax.broadcasted_iota(jnp.int32, (tq, tk), 1)
        _update(jnp.where(cols <= rows, s, -1e30))

    @pl.when(is_full)
    def _full():                                            # no iota / select work
        _update(_scores())

    @pl.when(ki == nk - 1)
    def _finalize():
        o_ref[0, 0] = (acc_sc[...] * pl.reciprocal(l_sc[...], approx=True)
                       ).astype(o_ref.dtype)


def block_output_kernel(attn_ref, x_ref, wo_ref, bo_ref, g_ref, b_ref,
                        w1_ref, b1_ref, w2_ref, b2_ref, o_ref,
                        y_sc, yn_sc, acc_sc, *, n_heads):
    """Attention output projection + residual + LN2 + MLP (hidden-dim tiled) + residual."""
    f = pl.program_id(2)
    nf = pl.num_programs(2)

    @pl.when(f == 0)
    def _prologue():
        # Per-head accumulation into a single (TS, D) f32 value: no (H, TS, D) temporary
        # and no H-way VPU reduction.
        y = x_ref[0].astype(jnp.float32) + bo_ref[...]
        for h in range(n_heads):
            y = y + jnp.dot(attn_ref[0, h], wo_ref[h],
                            preferred_element_type=jnp.float32)
        y_sc[...] = y
        yn_sc[...] = _layernorm(y, g_ref[...], b_ref[...]).astype(jnp.bfloat16)
        acc_sc[...] = jnp.zeros(acc_sc.shape, jnp.float32)

    # One MLP hidden-dim tile: (TS, D) @ (D, TF) -> GELU -> (TS, TF) @ (TF, D), accumulate.
    hdn = jnp.dot(yn_sc[...], w1_ref[...], preferred_element_type=jnp.float32) + b1_ref[...]
    acc_sc[...] += jnp.dot(_gelu(hdn).astype(jnp.bfloat16), w2_ref[...],
                           preferred_element_type=jnp.float32)

    @pl.when(f == nf - 1)
    def _epilogue():
        o_ref[0] = (y_sc[...] + acc_sc[...] + b2_ref[...]).astype(o_ref.dtype)


def final_linear_kernel(x_ref, w_ref, b_ref, o_ref):
    o_ref[0] = jnp.dot(x_ref[0], w_ref[...],
                       preferred_element_type=jnp.float32) + b_ref[...]


# ----------------------------------------------------------------------------
# pallas_call wrappers
# ----------------------------------------------------------------------------
def run_qkv_proj(x, ln_g, ln_b, w_qkv, b_qkv, n_heads, ts, vmem_limit):
    B, S, D = x.shape
    Dh = D // n_heads
    qkv_shape = jax.ShapeDtypeStruct((B, n_heads, S, Dh), jnp.bfloat16)
    return pl.pallas_call(
        functools.partial(qkv_proj_kernel, n_heads=n_heads),
        out_shape=(qkv_shape, qkv_shape, qkv_shape),
        grid=(B, S // ts),
        in_specs=[
            pl.BlockSpec((1, ts, D), lambda b, s: (b, s, 0)),
            _const_in_spec((1, D), lambda b, s: (0, 0)),
            _const_in_spec((1, D), lambda b, s: (0, 0)),
            _const_in_spec((D, 3 * D), lambda b, s: (0, 0)),
            _const_in_spec((1, 3 * D), lambda b, s: (0, 0)),
        ],
        out_specs=(
            pl.BlockSpec((1, n_heads, ts, Dh), lambda b, s: (b, 0, s, 0)),
            pl.BlockSpec((1, n_heads, ts, Dh), lambda b, s: (b, 0, s, 0)),
            pl.BlockSpec((1, n_heads, ts, Dh), lambda b, s: (b, 0, s, 0)),
        ),
        compiler_params=pltpu.CompilerParams(
            dimension_semantics=("parallel", "parallel"),
            vmem_limit_bytes=vmem_limit),
    )(x, ln_g, ln_b, w_qkv, b_qkv)


def run_attention(q, k, v, tq, tk, vmem_limit):
    B, H, S, Dh = q.shape

    def kv_index_map(b, h, qi, ki):
        # Clamp: fully-masked causal tiles reuse the last needed block index so their
        # K/V HBM DMA is skipped entirely (compute is gated by pl.when in the kernel).
        last_needed = ((qi + 1) * tq - 1) // tk
        return (b, h, jnp.minimum(ki, last_needed), 0)

    kern = functools.partial(flash_attn_kernel, scale=1.0 / math.sqrt(Dh), tq=tq, tk=tk)
    return pl.pallas_call(
        kern,
        out_shape=jax.ShapeDtypeStruct((B, H, S, Dh), jnp.bfloat16),
        grid=(B, H, S // tq, S // tk),
        in_specs=[
            pl.BlockSpec((1, 1, tq, Dh), lambda b, h, qi, ki: (b, h, qi, 0)),
            pl.BlockSpec((1, 1, tk, Dh), kv_index_map),
            pl.BlockSpec((1, 1, tk, Dh), kv_index_map),
        ],
        out_specs=pl.BlockSpec((1, 1, tq, Dh), lambda b, h, qi, ki: (b, h, qi, 0)),
        scratch_shapes=[
            pltpu.VMEM((tq, 1), jnp.float32),     # m
            pltpu.VMEM((tq, 1), jnp.float32),     # l
            pltpu.VMEM((tq, Dh), jnp.float32),    # acc
        ],
        compiler_params=pltpu.CompilerParams(
            dimension_semantics=("parallel", "parallel", "parallel", "arbitrary"),
            vmem_limit_bytes=vmem_limit),
    )(q, k, v)


def run_block_output(attn, x, wo_heads, b_o, ln_g, ln_b, w1, b1, w2, b2, ts, tf, vmem_limit):
    B, S, D = x.shape
    H, Dh, _ = wo_heads.shape
    Dff = w1.shape[1]
    kern = functools.partial(block_output_kernel, n_heads=H)
    return pl.pallas_call(
        kern,
        out_shape=jax.ShapeDtypeStruct((B, S, D), jnp.bfloat16),
        grid=(B, S // ts, Dff // tf),
        in_specs=[
            pl.BlockSpec((1, H, ts, Dh), lambda b, s, f: (b, 0, s, 0)),     # attn out
            pl.BlockSpec((1, ts, D), lambda b, s, f: (b, s, 0)),            # residual x
            _const_in_spec((H, Dh, D), lambda b, s, f: (0, 0, 0)),          # Wo head-major
            _const_in_spec((1, D), lambda b, s, f: (0, 0)),                 # bo
            _const_in_spec((1, D), lambda b, s, f: (0, 0)),                 # ln2 gamma
            _const_in_spec((1, D), lambda b, s, f: (0, 0)),                 # ln2 beta
            pl.BlockSpec((D, tf), lambda b, s, f: (0, f)),                  # w1 tile (streams)
            pl.BlockSpec((1, tf), lambda b, s, f: (0, f)),                  # b1 tile
            pl.BlockSpec((tf, D), lambda b, s, f: (f, 0)),                  # w2 tile (streams)
            _const_in_spec((1, D), lambda b, s, f: (0, 0)),                 # b2
        ],
        out_specs=pl.BlockSpec((1, ts, D), lambda b, s, f: (b, s, 0)),
        scratch_shapes=[
            pltpu.VMEM((ts, D), jnp.float32),     # y  (attn proj + residual)
            pltpu.VMEM((ts, D), jnp.bfloat16),    # LN2(y) cached across hidden tiles
            pltpu.VMEM((ts, D), jnp.float32),     # MLP accumulator
        ],
        compiler_params=pltpu.CompilerParams(
            dimension_semantics=("parallel", "parallel", "arbitrary"),
            vmem_limit_bytes=vmem_limit),
    )(attn, x, wo_heads, b_o, ln_g, ln_b, w1, b1, w2, b2)


def run_final_linear(x, w, b, ts, tv, vmem_limit):
    B, S, D = x.shape
    V = w.shape[1]
    return pl.pallas_call(
        final_linear_kernel,
        out_shape=jax.ShapeDtypeStruct((B, S, V), jnp.float32),
        # vocab axis outer, seq axis innermost: the (D, tv) weight tile's block index is
        # constant over the inner axis -> stays resident; only the small (ts, D)
        # activation tile re-streams.
        grid=(B, V // tv, S // ts),
        in_specs=[
            pl.BlockSpec((1, ts, D), lambda b, v, s: (b, s, 0)),
            pl.BlockSpec((D, tv), lambda b, v, s: (0, v)),
            pl.BlockSpec((1, tv), lambda b, v, s: (0, v)),
        ],
        out_specs=pl.BlockSpec((1, ts, tv), lambda b, v, s: (b, s, v)),
        compiler_params=pltpu.CompilerParams(
            dimension_semantics=("parallel", "parallel", "parallel"),
            vmem_limit_bytes=vmem_limit),
    )(x, w, b)


# ----------------------------------------------------------------------------
# Parameters + full forward
# ----------------------------------------------------------------------------
def sinusoidal_pe(seq_len, d_model):
    pos = jnp.arange(seq_len, dtype=jnp.float32)[:, None]
    i = jnp.arange(0, d_model, 2, dtype=jnp.float32)[None, :]
    div = jnp.exp(-i * (math.log(10000.0) / d_model))
    pe = jnp.zeros((seq_len, d_model), jnp.float32)
    pe = pe.at[:, 0::2].set(jnp.sin(pos * div))
    pe = pe.at[:, 1::2].set(jnp.cos(pos * div))
    return pe


def init_params(key, vocab_size, d_model, n_heads, n_blocks):
    ks = jax.random.split(key, 2 + n_blocks)

    def nrm(k, shape, std=0.02):
        return std * jax.random.normal(k, shape, jnp.float32)

    emb = jax.random.normal(ks[0], (vocab_size, d_model), jnp.float32)  # nn.Embedding ~ N(0,1)
    D = d_model
    Dh = D // n_heads

    blocks = []
    for blk in range(n_blocks):
        bk = jax.random.split(ks[1 + blk], 4)
        w_o = nrm(bk[1], (D, D))
        blocks.append(dict(
            ln1_g=jnp.ones((1, D), jnp.float32),
            ln1_b=jnp.zeros((1, D), jnp.float32),
            w_qkv=nrm(bk[0], (D, 3 * D)).astype(jnp.bfloat16),       # (in, out)
            b_qkv=jnp.zeros((1, 3 * D), jnp.float32),                # qkv_bias=True
            w_o=w_o.reshape(n_heads, Dh, D).astype(jnp.bfloat16),    # head-major
            b_o=jnp.zeros((1, D), jnp.float32),
            ln2_g=jnp.ones((1, D), jnp.float32),
            ln2_b=jnp.zeros((1, D), jnp.float32),
            w1=nrm(bk[2], (D, 4 * D)).astype(jnp.bfloat16),
            b1=jnp.zeros((1, 4 * D), jnp.float32),
            w2=nrm(bk[3], (4 * D, D)).astype(jnp.bfloat16),
            b2=jnp.zeros((1, D), jnp.float32),
        ))

    w_final = nrm(ks[1 + n_blocks], (d_model, vocab_size)).astype(jnp.bfloat16)
    b_final = jnp.zeros((1, vocab_size), jnp.float32)
    return emb, blocks, (w_final, b_final)


def transformer_decoder_forward(tokens, params, n_heads):
    emb_table, blocks, (w_final, b_final) = params
    B, S = tokens.shape
    D = emb_table.shape[1]
    V = w_final.shape[1]

    vmem_limit = _vmem_budget_bytes()
    tgt = _tile_targets(vmem_limit)
    ts = _tile_sub(S, tgt["ts"])     # sequence tile for projections / MLP
    tq = _tile_sub(S, tgt["tq"])     # query tile
    tk = _tile_sub(S, tgt["tk"])     # key/value tile
    tv = _tile_lane(V, tgt["tv"])    # lane-dense vocab tile

    # glue: embedding gather + sinusoidal positional encoding (cheap, stays in JAX).
    # Residual stream carried in bf16; LN/softmax/GELU math stays f32 inside the kernels.
    h = (emb_table[tokens] + sinusoidal_pe(S, D)[None]).astype(jnp.bfloat16)

    # TODO(synk): cross-pallas_call weight prefetch (DMA futures) for the next layer's
    # w_qkv/w1/w2 is not implemented; weight streaming overlaps only within each call.
    for p in blocks:
        q, k, v = run_qkv_proj(h, p["ln1_g"], p["ln1_b"], p["w_qkv"], p["b_qkv"],
                               n_heads, ts, vmem_limit)
        attn = run_attention(q, k, v, tq, tk, vmem_limit)
        tf = _tile_lane(p["w1"].shape[1], tgt["tf"])
        h = run_block_output(attn, h, p["w_o"], p["b_o"], p["ln2_g"], p["ln2_b"],
                             p["w1"], p["b1"], p["w2"], p["b2"], ts, tf, vmem_limit)

    return run_final_linear(h, w_final, b_final, ts, tv, vmem_limit)   # (B, S, vocab) f32


# ----------------------------------------------------------------------------
if __name__ == "__main__":
    VOCAB = 64
    D_MODEL = 32
    N_HEADS = 4
    N_BLOCKS = 2
    B, S = 2, 8

    key = jax.random.PRNGKey(0)
    k_tok, k_par = jax.random.split(key)

    params = init_params(k_par, VOCAB, D_MODEL, N_HEADS, N_BLOCKS)
    tokens = jax.random.randint(k_tok, (B, S), 0, VOCAB, dtype=jnp.int32)

    out = transformer_decoder_forward(tokens, params, N_HEADS)
    out = jax.block_until_ready(out)
    assert out.shape == (B, S, VOCAB), out.shape
    assert bool(jnp.all(jnp.isfinite(out)))
    print("KERNEL_OK")
</pallas_src>

<mosaic_0001>
module attributes {stable_mosaic.version = 11 : i64} {
  func.func @_copy(%arg0: i32, %arg1: memref<8x128xf32, #tpu.memory_space<vmem>>, %arg2: memref<8x128xf32, #tpu.memory_space<vmem>>) attributes {dimension_semantics = [#tpu.dimension_semantics<arbitrary>], iteration_bounds = array<i64: 1>, scalar_prefetch = 0 : i64, scratch_operands = 0 : i64, tpu.core_type = #tpu.core_type<tc>, window_params = [{pipeline_mode = #tpu.pipeline_mode<synchronous>, transform_indices = @transform_0, window_bounds = array<i64: 8, 128>}, {pipeline_mode = #tpu.pipeline_mode<synchronous>, transform_indices = @transform_1, window_bounds = array<i64: 8, 128>}]} {
    %c0 = arith.constant 0 : index
    %c0_0 = arith.constant 0 : index
    %0 = vector.load %arg1[%c0, %c0_0] : memref<8x128xf32, #tpu.memory_space<vmem>>, vector<8x128xf32>
    %c0_1 = arith.constant 0 : index
    %c0_2 = arith.constant 0 : index
    %1 = vector.load %arg2[%c0_1, %c0_2] : memref<8x128xf32, #tpu.memory_space<vmem>>, vector<8x128xf32>
    tpu.vector_store %arg2[%c0_1, %c0_2], %0 {strides = array<i32>} : memref<8x128xf32, #tpu.memory_space<vmem>>, vector<8x128xf32>,
    return
  }
  func.func @transform_0(%arg0: i32) -> (i32, i32) {
    %c0_i32 = arith.constant 0 : i32
    %c0_i32_0 = arith.constant 0 : i32
    %c0_i32_1 = arith.constant 0 : i32
    return %c0_i32, %c0_i32_0 : i32, i32
  }
  func.func @transform_1(%arg0: i32) -> (i32, i32) {
    %c0_i32 = arith.constant 0 : i32
    %c0_i32_0 = arith.constant 0 : i32
    %c0_i32_1 = arith.constant 0 : i32
    return %c0_i32, %c0_i32_0 : i32, i32
  }
}

module attributes {stable_mosaic.version = 11 : i64} {
  func.func @qkv_proj_kernel(%arg0: i32, %arg1: i32, %arg2: memref<1x8x32xbf16, #tpu.memory_space<vmem>>, %arg3: memref<1x32xf32, #tpu.memory_space<vmem>>, %arg4: memref<1x32xf32, #tpu.memory_space<vmem>>, %arg5: memref<32x96xbf16, #tpu.memory_space<vmem>>, %arg6: memref<1x96xf32, #tpu.memory_space<vmem>>, %arg7: memref<1x4x8x8xbf16, #tpu.memory_space<vmem>>, %arg8: memref<1x4x8x8xbf16, #tpu.memory_space<vmem>>, %arg9: memref<1x4x8x8xbf16, #tpu.memory_space<vmem>>) attributes {dimension_semantics = [#tpu.dimension_semantics<parallel>, #tpu.dimension_semantics<parallel>], iteration_bounds = array<i64: 2, 1>, scalar_prefetch = 0 : i64, scratch_operands = 0 : i64, tpu.core_type = #tpu.core_type<tc>, window_params = [{transform_indices = @transform_0, window_bounds = array<i64: 1, 8, 32>}, {pipeline_mode = #tpu.pipeline_mode<synchronous>, transform_indices = @transform_1, window_bounds = array<i64: 1, 32>}, {pipeline_mode = #tpu.pipeline_mode<synchronous>, transform_indices = @transform_2, window_bounds = array<i64: 1, 32>}, {pipeline_mode = #tpu.pipeline_mode<synchronous>, transform_indices = @transform_3, window_bounds = array<i64: 32, 96>}, {pipeline_mode = #tpu.pipeline_mode<synchronous>, transform_indices = @transform_4, window_bounds = array<i64: 1, 96>}, {transform_indices = @transform_5, window_bounds = array<i64: 1, 4, 8, 8>}, {transform_indices = @transform_6, window_bounds = array<i64: 1, 4, 8, 8>}, {transform_indices = @transform_7, window_bounds = array<i64: 1, 4, 8, 8>}]} {
    %c0 = arith.constant 0 : index
    %c0_0 = arith.constant 0 : index
    %c0_1 = arith.constant 0 : index
    %0 = vector.load %arg2[%c0, %c0_0, %c0_1] : memref<1x8x32xbf16, #tpu.memory_space<vmem>>, vector<1x8x32xbf16>
    %1 = vector.shape_cast %0 : vector<1x8x32xbf16> to vector<8x32xbf16>
    %2 = arith.extf %1 : vector<8x32xbf16> to vector<8x32xf32>
    %c0_2 = arith.constant 0 : index
    %c0_3 = arith.constant 0 : index
    %3 = vector.load %arg3[%c0_2, %c0_3] : memref<1x32xf32, #tpu.memory_space<vmem>>, vector<1x32xf32>
    %c0_4 = arith.constant 0 : index
    %c0_5 = arith.constant 0 : index
    %4 = vector.load %arg4[%c0_4, %c0_5] : memref<1x32xf32, #tpu.memory_space<vmem>>, vector<1x32xf32>
    %cst = arith.constant dense<0.000000e+00> : vector<8xf32>
    %5 = vector.multi_reduction <add>, %2, %cst [1] : vector<8x32xf32> to vector<8xf32>
    %6 = vector.shape_cast %5 : vector<8xf32> to vector<8x1xf32>
    %cst_6 = arith.constant 3.200000e+01 : f32
    %7 = vector.broadcast %cst_6 : f32 to vector<8x1xf32>
    %8 = arith.divf %6, %7 : vector<8x1xf32>
    %9 = vector.broadcast %8 : vector<8x1xf32> to vector<8x32xf32>
    %10 = arith.subf %2, %9 : vector<8x32xf32>
    %11 = arith.mulf %10, %10 : vector<8x32xf32>
    %cst_7 = arith.constant dense<0.000000e+00> : vector<8xf32>
    %12 = vector.multi_reduction <add>, %11, %cst_7 [1] : vector<8x32xf32> to vector<8xf32>
    %13 = vector.shape_cast %12 : vector<8xf32> to vector<8x1xf32>
    %cst_8 = arith.constant 3.200000e+01 : f32
    %14 = vector.broadcast %cst_8 : f32 to vector<8x1xf32>
    %15 = arith.divf %13, %14 : vector<8x1xf32>
    %16 = vector.broadcast %8 : vector<8x1xf32> to vector<8x32xf32>
    %17 = arith.subf %2, %16 : vector<8x32xf32>
    %cst_9 = arith.constant 9.99999974E-6 : f32
    %18 = vector.broadcast %cst_9 : f32 to vector<8x1xf32>
    %19 = arith.addf %15, %18 : vector<8x1xf32>
    %20 = math.rsqrt %19 : vector<8x1xf32>
    %21 = vector.broadcast %20 : vector<8x1xf32> to vector<8x32xf32>
    %22 = arith.mulf %17, %21 : vector<8x32xf32>
    %23 = vector.broadcast %3 : vector<1x32xf32> to vector<8x32xf32>
    %24 = arith.mulf %22, %23 : vector<8x32xf32>
    %25 = vector.broadcast %4 : vector<1x32xf32> to vector<8x32xf32>
    %26 = arith.addf %24, %25 : vector<8x32xf32>
    %27 = arith.truncf %26 : vector<8x32xf32> to vector<8x32xbf16>
    %c0_10 = arith.constant 0 : index
    %c0_11 = arith.constant 0 : index
    %28 = vector.load %arg5[%c0_10, %c0_11] : memref<32x96xbf16, #tpu.memory_space<vmem>>, vector<32x96xbf16>
    %cst_12 = arith.constant dense<0.000000e+00> : vector<8x96xf32>
    %29 = tpu.matmul %27, %28, %cst_12 {dimension_numbers = #tpu.dot_dimension_numbers<[1], [0], [0], [1], [0, 0, 1, 1], [], []>} : vector<8x32xbf16>, vector<32x96xbf16>, vector<8x96xf32> -> vector<8x96xf32>
    %c0_13 = arith.constant 0 : index
    %c0_14 = arith.constant 0 : index
    %30 = vector.load %arg6[%c0_13, %c0_14] : memref<1x96xf32, #tpu.memory_space<vmem>>, vector<1x96xf32>
    %31 = vector.broadcast %30 : vector<1x96xf32> to vector<8x96xf32>
    %32 = arith.addf %29, %31 : vector<8x96xf32>
    %33 = vector.extract_strided_slice %32 {offsets = [0, 0], sizes = [8, 8], strides = [1, 1]} : vector<8x96xf32> to vector<8x8xf32>
    %34 = arith.truncf %33 : vector<8x8xf32> to vector<8x8xbf16>
    %c0_15 = arith.constant 0 : index
    %c0_16 = arith.constant 0 : index
    %c0_17 = arith.constant 0 : index
    %c0_18 = arith.constant 0 : index
    %35 = vector.load %arg7[%c0_15, %c0_16, %c0_17, %c0_18] : memref<1x4x8x8xbf16, #tpu.memory_space<vmem>>, vector<1x1x8x8xbf16>
    %36 = vector.shape_cast %35 : vector<1x1x8x8xbf16> to vector<8x8xbf16>
    %37 = vector.shape_cast %34 : vector<8x8xbf16> to vector<1x1x8x8xbf16>
    tpu.vector_store %arg7[%c0_15, %c0_16, %c0_17, %c0_18], %37 {strides = array<i32>} : memref<1x4x8x8xbf16, #tpu.memory_space<vmem>>, vector<1x1x8x8xbf16>,
    %38 = vector.extract_strided_slice %32 {offsets = [0, 32], sizes = [8, 8], strides = [1, 1]} : vector<8x96xf32> to vector<8x8xf32>
    %39 = arith.truncf %38 : vector<8x8xf32> to vector<8x8xbf16>
    %c0_19 = arith.constant 0 : index
    %c0_20 = arith.constant 0 : index
    %c0_21 = arith.constant 0 : index
    %c0_22 = arith.constant 0 : index
    %40 = vector.load %arg8[%c0_19, %c0_20, %c0_21, %c0_22] : memref<1x4x8x8xbf16, #tpu.memory_space<vmem>>, vector<1x1x8x8xbf16>
    %41 = vector.shape_cast %40 : vector<1x1x8x8xbf16> to vector<8x8xbf16>
    %42 = vector.shape_cast %39 : vector<8x8xbf16> to vector<1x1x8x8xbf16>
    tpu.vector_store %arg8[%c0_19, %c0_20, %c0_21, %c0_22], %42 {strides = array<i32>} : memref<1x4x8x8xbf16, #tpu.memory_space<vmem>>, vector<1x1x8x8xbf16>,
    %43 = vector.extract_strided_slice %32 {offsets = [0, 64], sizes = [8, 8], strides = [1, 1]} : vector<8x96xf32> to vector<8x8xf32>
    %44 = arith.truncf %43 : vector<8x8xf32> to vector<8x8xbf16>
    %c0_23 = arith.constant 0 : index
    %c0_24 = arith.constant 0 : index
    %c0_25 = arith.constant 0 : index
    %c0_26 = arith.constant 0 : index
    %45 = vector.load %arg9[%c0_23, %c0_24, %c0_25, %c0_26] : memref<1x4x8x8xbf16, #tpu.memory_space<vmem>>, vector<1x1x8x8xbf16>
    %46 = vector.shape_cast %45 : vector<1x1x8x8xbf16> to vector<8x8xbf16>
    %47 = vector.shape_cast %44 : vector<8x8xbf16> to vector<1x1x8x8xbf16>
    tpu.vector_store %arg9[%c0_23, %c0_24, %c0_25, %c0_26], %47 {strides = array<i32>} : memref<1x4x8x8xbf16, #tpu.memory_space<vmem>>, vector<1x1x8x8xbf16>,
    %48 = vector.extract_strided_slice %32 {offsets = [0, 8], sizes = [8, 8], strides = [1, 1]} : vector<8x96xf32> to vector<8x8xf32>
    %49 = arith.truncf %48 : vector<8x8xf32> to vector<8x8xbf16>
    %c0_27 = arith.constant 0 : index
    %c1 = arith.constant 1 : index
    %c0_28 = arith.constant 0 : index
    %c0_29 = arith.constant 0 : index
    %50 = vector.load %arg7[%c0_27, %c1, %c0_28, %c0_29] : memref<1x4x8x8xbf16, #tpu.memory_space<vmem>>, vector<1x1x8x8xbf16>
    %51 = vector.shape_cast %50 : vector<1x1x8x8xbf16> to vector<8x8xbf16>
    %52 = vector.shape_cast %49 : vector<8x8xbf16> to vector<1x1x8x8xbf16>
    tpu.vector_store %arg7[%c0_27, %c1, %c0_28, %c0_29], %52 {strides = array<i32>} : memref<1x4x8x8xbf16, #tpu.memory_space<vmem>>, vector<1x1x8x8xbf16>,
    %53 = vector.extract_strided_slice %32 {offsets = [0, 40], sizes = [8, 8], strides = [1, 1]} : vector<8x96xf32> to vector<8x8xf32>
    %54 = arith.truncf %53 : vector<8x8xf32> to vector<8x8xbf16>
    %c0_30 = arith.constant 0 : index
    %c1_31 = arith.constant 1 : index
    %c0_32 = arith.constant 0 : index
    %c0_33 = arith.constant 0 : index
    %55 = vector.load %arg8[%c0_30, %c1_31, %c0_32, %c0_33] : memref<1x4x8x8xbf16, #tpu.memory_space<vmem>>, vector<1x1x8x8xbf16>
    %56 = vector.shape_cast %55 : vector<1x1x8x8xbf16> to vector<8x8xbf16>
    %57 = vector.shape_cast %54 : vector<8x8xbf16> to vector<1x1x8x8xbf16>
    tpu.vector_store %arg8[%c0_30, %c1_31, %c0_32, %c0_33], %57 {strides = array<i32>} : memref<1x4x8x8xbf16, #tpu.memory_space<vmem>>, vector<1x1x8x8xbf16>,
    %58 = vector.extract_strided_slice %32 {offsets = [0, 72], sizes = [8, 8], strides = [1, 1]} : vector<8x96xf32> to vector<8x8xf32>
    %59 = arith.truncf %58 : vector<8x8xf32> to vector<8x8xbf16>
    %c0_34 = arith.constant 0 : index
    %c1_35 = arith.constant 1 : index
    %c0_36 = arith.constant 0 : index
    %c0_37 = arith.constant 0 : index
    %60 = vector.load %arg9[%c0_34, %c1_35, %c0_36, %c0_37] : memref<1x4x8x8xbf16, #tpu.memory_space<vmem>>, vector<1x1x8x8xbf16>
    %61 = vector.shape_cast %60 : vector<1x1x8x8xbf16> to vector<8x8xbf16>
    %62 = vector.shape_cast %59 : vector<8x8xbf16> to vector<1x1x8x8xbf16>
    tpu.vector_store %arg9[%c0_34, %c1_35, %c0_36, %c0_37], %62 {strides = array<i32>} : memref<1x4x8x8xbf16, #tpu.memory_space<vmem>>, vector<1x1x8x8xbf16>,
    %63 = vector.extract_strided_slice %32 {offsets = [0, 16], sizes = [8, 8], strides = [1, 1]} : vector<8x96xf32> to vector<8x8xf32>
    %64 = arith.truncf %63 : vector<8x8xf32> to vector<8x8xbf16>
    %c0_38 = arith.constant 0 : index
    %c2 = arith.constant 2 : index
    %c0_39 = arith.constant 0 : index
    %c0_40 = arith.constant 0 : index
    %65 = vector.load %arg7[%c0_38, %c2, %c0_39, %c0_40] : memref<1x4x8x8xbf16, #tpu.memory_space<vmem>>, vector<1x1x8x8xbf16>
    %66 = vector.shape_cast %65 : vector<1x1x8x8xbf16> to vector<8x8xbf16>
    %67 = vector.shape_cast %64 : vector<8x8xbf16> to vector<1x1x8x8xbf16>
    tpu.vector_store %arg7[%c0_38, %c2, %c0_39, %c0_40], %67 {strides = array<i32>} : memref<1x4x8x8xbf16, #tpu.memory_space<vmem>>, vector<1x1x8x8xbf16>,
    %68 = vector.extract_strided_slice %32 {offsets = [0, 48], sizes = [8, 8], strides = [1, 1]} : vector<8x96xf32> to vector<8x8xf32>
    %69 = arith.truncf %68 : vector<8x8xf32> to vector<8x8xbf16>
    %c0_41 = arith.constant 0 : index
    %c2_42 = arith.constant 2 : index
    %c0_43 = arith.constant 0 : index
    %c0_44 = arith.constant 0 : index
    %70 = vector.load %arg8[%c0_41, %c2_42, %c0_43, %c0_44] : memref<1x4x8x8xbf16, #tpu.memory_space<vmem>>, vector<1x1x8x8xbf16>
    %71 = vector.shape_cast %70 : vector<1x1x8x8xbf16> to vector<8x8xbf16>
    %72 = vector.shape_cast %69 : vector<8x8xbf16> to vector<1x1x8x8xbf16>
    tpu.vector_store %arg8[%c0_41, %c2_42, %c0_43, %c0_44], %72 {strides = array<i32>} : memref<1x4x8x8xbf16, #tpu.memory_space<vmem>>, vector<1x1x8x8xbf16>,
    %73 = vector.extract_strided_slice %32 {offsets = [0, 80], sizes = [8, 8], strides = [1, 1]} : vector<8x96xf32> to vector<8x8xf32>
    %74 = arith.truncf %73 : vector<8x8xf32> to vector<8x8xbf16>
    %c0_45 = arith.constant 0 : index
    %c2_46 = arith.constant 2 : index
    %c0_47 = arith.constant 0 : index
    %c0_48 = arith.constant 0 : index
    %75 = vector.load %arg9[%c0_45, %c2_46, %c0_47, %c0_48] : memref<1x4x8x8xbf16, #tpu.memory_space<vmem>>, vector<1x1x8x8xbf16>
    %76 = vector.shape_cast %75 : vector<1x1x8x8xbf16> to vector<8x8xbf16>
    %77 = vector.shape_cast %74 : vector<8x8xbf16> to vector<1x1x8x8xbf16>
    tpu.vector_store %arg9[%c0_45, %c2_46, %c0_47, %c0_48], %77 {strides = array<i32>} : memref<1x4x8x8xbf16, #tpu.memory_space<vmem>>, vector<1x1x8x8xbf16>,
    %78 = vector.extract_strided_slice %32 {offsets = [0, 24], sizes = [8, 8], strides = [1, 1]} : vector<8x96xf32> to vector<8x8xf32>
    %79 = arith.truncf %78 : vector<8x8xf32> to vector<8x8xbf16>
    %c0_49 = arith.constant 0 : index
    %c3 = arith.constant 3 : index
    %c0_50 = arith.constant 0 : index
    %c0_51 = arith.constant 0 : index
    %80 = vector.load %arg7[%c0_49, %c3, %c0_50, %c0_51] : memref<1x4x8x8xbf16, #tpu.memory_space<vmem>>, vector<1x1x8x8xbf16>
    %81 = vector.shape_cast %80 : vector<1x1x8x8xbf16> to vector<8x8xbf16>
    %82 = vector.shape_cast %79 : vector<8x8xbf16> to vector<1x1x8x8xbf16>
    tpu.vector_store %arg7[%c0_49, %c3, %c0_50, %c0_51], %82 {strides = array<i32>} : memref<1x4x8x8xbf16, #tpu.memory_space<vmem>>, vector<1x1x8x8xbf16>,
    %83 = vector.extract_strided_slice %32 {offsets = [0, 56], sizes = [8, 8], strides = [1, 1]} : vector<8x96xf32> to vector<8x8xf32>
    %84 = arith.truncf %83 : vector<8x8xf32> to vector<8x8xbf16>
    %c0_52 = arith.constant 0 : index
    %c3_53 = arith.constant 3 : index
    %c0_54 = arith.constant 0 : index
    %c0_55 = arith.constant 0 : index
    %85 = vector.load %arg8[%c0_52, %c3_53, %c0_54, %c0_55] : memref<1x4x8x8xbf16, #tpu.memory_space<vmem>>, vector<1x1x8x8xbf16>
    %86 = vector.shape_cast %85 : vector<1x1x8x8xbf16> to vector<8x8xbf16>
    %87 = vector.shape_cast %84 : vector<8x8xbf16> to vector<1x1x8x8xbf16>
    tpu.vector_store %arg8[%c0_52, %c3_53, %c0_54, %c0_55], %87 {strides = array<i32>} : memref<1x4x8x8xbf16, #tpu.memory_space<vmem>>, vector<1x1x8x8xbf16>,
    %88 = vector.extract_strided_slice %32 {offsets = [0, 88], sizes = [8, 8], strides = [1, 1]} : vector<8x96xf32> to vector<8x8xf32>
    %89 = arith.truncf %88 : vector<8x8xf32> to vector<8x8xbf16>
    %c0_56 = arith.constant 0 : index
    %c3_57 = arith.constant 3 : index
    %c0_58 = arith.constant 0 : index
    %c0_59 = arith.constant 0 : index
    %90 = vector.load %arg9[%c0_56, %c3_57, %c0_58, %c0_59] : memref<1x4x8x8xbf16, #tpu.memory_space<vmem>>, vector<1x1x8x8xbf16>
    %91 = vector.shape_cast %90 : vector<1x1x8x8xbf16> to vector<8x8xbf16>
    %92 = vector.shape_cast %89 : vector<8x8xbf16> to vector<1x1x8x8xbf16>
    tpu.vector_store %arg9[%c0_56, %c3_57, %c0_58, %c0_59], %92 {strides = array<i32>} : memref<1x4x8x8xbf16, #tpu.memory_space<vmem>>, vector<1x1x8x8xbf16>,
    return
  }
  func.func @transform_0(%arg0: i32, %arg1: i32) -> (i32, i32, i32) {
    %c0_i32 = arith.constant 0 : i32
    %c0_i32_0 = arith.constant 0 : i32
    return %arg0, %arg1, %c0_i32 : i32, i32, i32
  }
  func.func @transform_1(%arg0: i32, %arg1: i32) -> (i32, i32) {
    %c0_i32 = arith.constant 0 : i32
    %c0_i32_0 = arith.constant 0 : i32
    %c0_i32_1 = arith.constant 0 : i32
    return %c0_i32, %c0_i32_0 : i32, i32
  }
  func.func @transform_2(%arg0: i32, %arg1: i32) -> (i32, i32) {
    %c0_i32 = arith.constant 0 : i32
    %c0_i32_0 = arith.constant 0 : i32
    %c0_i32_1 = arith.constant 0 : i32
    return %c0_i32, %c0_i32_0 : i32, i32
  }
  func.func @transform_3(%arg0: i32, %arg1: i32) -> (i32, i32) {
    %c0_i32 = arith.constant 0 : i32
    %c0_i32_0 = arith.constant 0 : i32
    %c0_i32_1 = arith.constant 0 : i32
    return %c0_i32, %c0_i32_0 : i32, i32
  }
  func.func @transform_4(%arg0: i32, %arg1: i32) -> (i32, i32) {
    %c0_i32 = arith.constant 0 : i32
    %c0_i32_0 = arith.constant 0 : i32
    %c0_i32_1 = arith.constant 0 : i32
    return %c0_i32, %c0_i32_0 : i32, i32
  }
  func.func @transform_5(%arg0: i32, %arg1: i32) -> (i32, i32, i32, i32) {
    %c0_i32 = arith.constant 0 : i32
    %c0_i32_0 = arith.constant 0 : i32
    %c0_i32_1 = arith.constant 0 : i32
    return %arg0, %c0_i32, %arg1, %c0_i32_0 : i32, i32, i32, i32
  }
  func.func @transform_6(%arg0: i32, %arg1: i32) -> (i32, i32, i32, i32) {
    %c0_i32 = arith.constant 0 : i32
    %c0_i32_0 = arith.constant 0 : i32
    %c0_i32_1 = arith.constant 0 : i32
    return %arg0, %c0_i32, %arg1, %c0_i32_0 : i32, i32, i32, i32
  }
  func.func @transform_7(%arg0: i32, %arg1: i32) -> (i32, i32, i32, i32) {
    %c0_i32 = arith.constant 0 : i32
    %c0_i32_0 = arith.constant 0 : i32
    %c0_i32_1 = arith.constant 0 : i32
    return %arg0, %c0_i32, %arg1, %c0_i32_0 : i32, i32, i32, i32
  }
}

</mosaic_0001>

<llo_original>
// kernel: tpu_custom_call.1
$region0: #{tpu_custom_call.1}
  #allocation0 [shape = 'u32[]', space=smem, size = 0x4, offset = 0x4, fixed_abs, tag = 'smem constant byte address 0x4 - core index']
  #allocation1 [shape = 'u32[72,128]{1,0:T(1,128)}', space=vmem, size = 0x9000, scoped, tag = 'internal scratch']
  %s0 = inlined_call_operand.hbm [shape: f32[8,128], index: 0, kind: input, shape index: {}]
  %s1 = inlined_call_operand.hbm [shape: f32[8,128], index: 1, kind: output, shape index: {}]
  %s2 = sld [smem:[#allocation0]]
  $region18: #{tpu_custom_call.1} parent=0
    _
  %s4 = ssub.s32 1, %s2
  %s5 = scalar_select 0, %s4, %s2
  $region1: #{tpu_custom_call.1} parent=0
    #allocation2 [shape = 'u8[4096]{0}', space=vmem, size = 0x1000, scoped, tag = 'input window, operand 0, single buffered']
    #allocation3 [shape = 's32[1]{0}', space=sflag, size = 0x4, scoped, tag = 'scoped memory for tpu_custom_call.1']
    #allocation4 [shape = 's32[1]{0}', space=sflag, size = 0x4, scoped, tag = 'scoped memory for tpu_custom_call.1']
    #allocation5 [shape = 'u8[4096]{0}', space=vmem, size = 0x1000, scoped, tag = 'output window, operand 0, single buffered']
    %6 = vsyncpa [#allocation3], 0
    %7 = vsyncpa [#allocation4], 0
    // Predicated region
    $region2: #{tpu_custom_call.1} parent=1 // pred_check
      _
    $region3: #{tpu_custom_call.1} parent=1 // pred_check_branch
      %9 = sbr.rel (0) target = $region5
    $region4: #{tpu_custom_call.1} parent=1 // pred_region
      %11 = vsyncadd [#allocation3], 0
      %s13 = sshll.u32 %s0, 4
      %s14 = int_to_ptr.hbm [resolvable:$true] %s13
      %s15 = sshll.u32 [#allocation2], 4
      %s16 = int_to_ptr.vmem [resolvable:$true] %s15
      %18 = dma.hbm_to_vmem [thread:$0]  %s14, 128, %s16, [#allocation3]
    $region5: #{tpu_custom_call.1} parent=1 // pred_fallthru
      _
    // Predicated region
    $region6: #{tpu_custom_call.1} parent=1 // pred_check
      _
    $region7: #{tpu_custom_call.1} parent=1 // pred_check_branch
      %20 = sbr.rel (0) target = $region9
    $region8: #{tpu_custom_call.1} parent=1 // pred_region
      %22 = dma.done [#allocation3], 128
    $region9: #{tpu_custom_call.1} parent=1 // pred_fallthru
      _
    %v23 = vld [vmem:[#allocation2] sm:$0xff]
    %24 = vst [vmem:[#allocation5] sm:$0xff] %v23
    // Predicated region
    $region10: #{tpu_custom_call.1} parent=1 // pred_check
      _
    $region11: #{tpu_custom_call.1} parent=1 // pred_check_branch
      %26 = sbr.rel (0) target = $region13
    $region12: #{tpu_custom_call.1} parent=1 // pred_region
      %28 = vsyncadd [#allocation4], 0
      %s30 = sshll.u32 [#allocation5], 4
      %s31 = int_to_ptr.vmem [resolvable:$true] %s30
      %s32 = sshll.u32 %s1, 4
      %s33 = int_to_ptr.hbm [resolvable:$true] %s32
      %35 = dma.vmem_to_hbm [thread:$0]  %s31, 128, %s33, [#allocation4]
    $region13: #{tpu_custom_call.1} parent=1 // pred_fallthru
      _
    // Predicated region
    $region14: #{tpu_custom_call.1} parent=1 // pred_check
      _
    $region15: #{tpu_custom_call.1} parent=1 // pred_check_branch
      %37 = sbr.rel (0) target = $region17
    $region16: #{tpu_custom_call.1} parent=1 // pred_region
      %39 = dma.done [#allocation4], 128
    $region17: #{tpu_custom_call.1} parent=1 // pred_fallthru
      _
    %40 = vsyncpa [#allocation3], 1
    %41 = vsyncpa [#allocation4], 1

// kernel: tpu_custom_call.1
$region0: #{tpu_custom_call.1}
  #allocation0 [shape = 'u32[]', space=smem, size = 0x4, offset = 0x4, fixed_abs, tag = 'smem constant byte address 0x4 - core index']
  #allocation1 [shape = 'u32[72,128]{1,0:T(1,128)}', space=vmem, size = 0x9000, scoped, tag = 'internal scratch']
  %s0 = inlined_call_operand.hbm [shape: bf16[2,8,32], index: 0, kind: input, shape index: {}]
  %s1 = inlined_call_operand.hbm [shape: f32[1,32], index: 1, kind: input, shape index: {}]
  %s2 = inlined_call_operand.vmem [shape: f32[1,32], index: 2, kind: input, shape index: {}]
  %s3 = inlined_call_operand.hbm [shape: bf16[32,96], index: 3, kind: input, shape index: {}]
  %s4 = inlined_call_operand.vmem [shape: f32[1,96], index: 4, kind: input, shape index: {}]
  %s5 = inlined_call_operand.hbm [shape: bf16[2,4,8,8], index: 5, kind: output, shape index: {0}]
  %s6 = inlined_call_operand.hbm [shape: bf16[2,4,8,8], index: 6, kind: output, shape index: {1}]
  %s7 = inlined_call_operand.hbm [shape: bf16[2,4,8,8], index: 7, kind: output, shape index: {2}]
  %8 = xla_tuple %s5, %s6, %s7
  %s9 = sld [smem:[#allocation0]]
  $region81: #{tpu_custom_call.1} parent=0
    _
  %s11 = ssub.s32 1, %s9
  %s12 = scalar_select 0, %s11, %s9
  $region1: #{tpu_custom_call.1} parent=0
    #allocation2 [shape = 'u8[4096]{0}', space=vmem, size = 0x1000, scoped, tag = 'input window, operand 0']
    #allocation3 [shape = 's32[2]{0}', space=sflag, size = 0x8, scoped, tag = 'scoped memory for tpu_custom_call.1']
    #allocation4 [shape = 's32[2]{0}', space=sflag, size = 0x8, scoped, tag = 'scoped memory for tpu_custom_call.1']
    #allocation5 [shape = 'u8[512]{0}', space=vmem, size = 0x400, scoped, tag = 'input window, operand 1, single buffered']
    #allocation6 [shape = 's32[1]{0}', space=sflag, size = 0x4, scoped, tag = 'scoped memory for tpu_custom_call.1']
    #allocation7 [shape = 'u8[8192]{0}', space=vmem, size = 0x2000, scoped, tag = 'input window, operand 3, single buffered']
    #allocation8 [shape = 'u8[16384]{0}', space=vmem, size = 0x4000, scoped, tag = 'output window, operand 0']
    #allocation9 [shape = 'u8[16384]{0}', space=vmem, size = 0x4000, scoped, tag = 'output window, operand 1']
    #allocation10 [shape = 's32[2]{0}', space=sflag, size = 0x8, scoped, tag = 'scoped memory for tpu_custom_call.1']
    #allocation11 [shape = 'u8[16384]{0}', space=vmem, size = 0x4000, scoped, tag = 'output window, operand 2']
    %13 = vsyncpa [#allocation3], 0
    %s14 = scalar_lea.sflag [#allocation3], 1
    %15 = vsyncpa %s14, 0
    %16 = vsyncpa [#allocation6], 0
    %17 = vsyncpa [#allocation4], 0
    %s18 = scalar_lea.sflag [#allocation4], 1
    %19 = vsyncpa %s18, 0
    %20 = vsyncpa [#allocation10], 0
    %s21 = scalar_lea.sflag [#allocation10], 1
    %22 = vsyncpa %s21, 0
    loop: start=0, step=1, limit=4
    $region2: #{tpu_custom_call.1} parent=1 // loop_pre_header
      _
    $region3: #{tpu_custom_call.1} parent=1 // loop_header
      %s24 = sphi 0, %s28
      %p25 = scmp.ge.s32.totalorder %s24, 4
      %s31 = sphi 0, %s43
      %s32 = sphi 0, %s39
      %s33 = sphi 0, %s31
      %s34 = sphi 0, %s32
      %s35 = sphi 0, %s33
      %s36 = sphi 0, %s34
      %s48 = sphi 0, %s50
      %s51 = sphi 0, %s48
      %s52 = sphi 0, %s51
      %s68 = sphi 0, %s52
      %s72 = sphi 0, %s72
      %s74 = sphi 0, %s72
      %s75 = sphi 0, %s74
      %s89 = sphi 0, %s75
      %s93 = sphi 0, %s93
      %s95 = sphi 0, %s93
      %s96 = sphi 0, %s95
      %s110 = sphi 0, %s96
      %s114 = sphi 0, %s114
      %s116 = sphi 0, %s114
      %s117 = sphi 0, %s116
      %s131 = sphi 0, %s117
      %s135 = sphi 0, %s135
      %s137 = sphi 0, %s135
      %s138 = sphi 0, %s137
      %s152 = sphi 0, %s138
      %s160 = sphi 0, %s162
      %s163 = sphi 0, %s160
      %s164 = sphi 0, %s163
      %s180 = sphi 0, %s164
      %s188 = sphi 0, %s190
      %s191 = sphi 0, %s188
      %s192 = sphi 0, %s191
      %s208 = sphi 0, %s192
      %s216 = sphi 0, %s218
      %s219 = sphi 0, %s216
      %s220 = sphi 0, %s219
      %s236 = sphi 0, %s220
    $region4: #{tpu_custom_call.1} parent=1 // loop_header_branch
      %27 = sbr.rel (%p25) target = $region8
    $region5: #{tpu_custom_call.1} parent=1 // loop_body
      %s29 = ssub.s32 %s24, 1
      %s30 = ssub.s32 %s24, 2
      %s37 = sadd.s32 1, %s32
      %p38 = scmp.ge.s32.totalorder %s37, 1
      %s39 = scalar_select %p38, 0, %s37
      %s40 = sadd.s32 1, %s31
      %s41 = scalar_select %p38, %s40, %s31
      %p42 = scmp.ge.s32.totalorder %s41, 2
      %s43 = scalar_select %p42, 0, %s41
      %s44 = ssub.s32 %s31, %s43
      %s45 = ssub.s32 %s32, %s39
      %s46 = sor.u32 %s44, %s45
      %p47 = scmp.eq.s32.totalorder %s46, 0
      %s49 = sadd.s32 %s48, 1
      %s50 = scalar_select %p47, %s48, %s49
      %p53 = pneg %p47
      %p54 = scmp.eq.s32.totalorder %s24, 1
      %p55 = por %p53, %p54
      %p56 = scmp.ne.s32.totalorder %s48, %s51
      %p57 = scmp.eq.s32.totalorder %s24, 0
      %p58 = por %p56, %p57
      %p59 = scmp.ne.s32.totalorder %s48, %s51
      %p60 = scmp.eq.s32.totalorder %s29, 1
      %p61 = por %p59, %p60
      %p62 = scmp.ne.s32.totalorder %s51, %s52
      %p63 = scmp.eq.s32.totalorder %s29, 0
      %p64 = por %p62, %p63
      %p65 = scmp.ne.s32.totalorder %s51, %s52
      %p66 = scmp.eq.s32.totalorder %s30, 1
      %p67 = por %p65, %p66
      %p69 = scmp.ne.s32.totalorder %s52, %s68
      %p70 = scmp.eq.s32.totalorder %s30, 0
      %p71 = por %p69, %p70
      %s73 = sadd.s32 %s72, 1
      %p76 = scmp.eq.s32.totalorder %s24, 1
      %p77 = scmp.ne.s32.totalorder %s72, %s74
      %p78 = scmp.eq.s32.totalorder %s24, 0
      %p79 = por %p77, %p78
      %p80 = scmp.ne.s32.totalorder %s72, %s74
      %p81 = scmp.eq.s32.totalorder %s29, 1
      %p82 = por %p80, %p81
      %p83 = scmp.ne.s32.totalorder %s74, %s75
      %p84 = scmp.eq.s32.totalorder %s29, 0
      %p85 = por %p83, %p84
      %p86 = scmp.ne.s32.totalorder %s74, %s75
      %p87 = scmp.eq.s32.totalorder %s30, 1
      %p88 = por %p86, %p87
      %p90 = scmp.ne.s32.totalorder %s75, %s89
      %p91 = scmp.eq.s32.totalorder %s30, 0
      %p92 = por %p90, %p91
      %s94 = sadd.s32 %s93, 1
      %p97 = scmp.eq.s32.totalorder %s24, 1
      %p98 = scmp.ne.s32.totalorder %s93, %s95
      %p99 = scmp.eq.s32.totalorder %s24, 0
      %p100 = por %p98, %p99
      %p101 = scmp.ne.s32.totalorder %s93, %s95
      %p102 = scmp.eq.s32.totalorder %s29, 1
      %p103 = por %p101, %p102
      %p104 = scmp.ne.s32.totalorder %s95, %s96
      %p105 = scmp.eq.s32.totalorder %s29, 0
      %p106 = por %p104, %p105
      %p107 = scmp.ne.s32.totalorder %s95, %s96
      %p108 = scmp.eq.s32.totalorder %s30, 1
      %p109 = por %p107, %p108
      %p111 = scmp.ne.s32.totalorder %s96, %s110
      %p112 = scmp.eq.s32.totalorder %s30, 0
      %p113 = por %p111, %p112
      %s115 = sadd.s32 %s114, 1
      %p118 = scmp.eq.s32.totalorder %s24, 1
      %p119 = scmp.ne.s32.totalorder %s114, %s116
      %p120 = scmp.eq.s32.totalorder %s24, 0
      %p121 = por %p119, %p120
      %p122 = scmp.ne.s32.totalorder %s114, %s116
      %p123 = scmp.eq.s32.totalorder %s29, 1
      %p124 = por %p122, %p123
      %p125 = scmp.ne.s32.totalorder %s116, %s117
      %p126 = scmp.eq.s32.totalorder %s29, 0
      %p127 = por %p125, %p126
      %p128 = scmp.ne.s32.totalorder %s116, %s117
      %p129 = scmp.eq.s32.totalorder %s30, 1
      %p130 = por %p128, %p129
      %p132 = scmp.ne.s32.totalorder %s117, %s131
      %p133 = scmp.eq.s32.totalorder %s30, 0
      %p134 = por %p132, %p133
      %s136 = sadd.s32 %s135, 1
      %p139 = scmp.eq.s32.totalorder %s24, 1
      %p140 = scmp.ne.s32.totalorder %s135, %s137
      %p141 = scmp.eq.s32.totalorder %s24, 0
      %p142 = por %p140, %p141
      %p143 = scmp.ne.s32.totalorder %s135, %s137
      %p144 = scmp.eq.s32.totalorder %s29, 1
      %p145 = por %p143, %p144
      %p146 = scmp.ne.s32.totalorder %s137, %s138
      %p147 = scmp.eq.s32.totalorder %s29, 0
      %p148 = por %p146, %p147
      %p149 = scmp.ne.s32.totalorder %s137, %s138
      %p150 = scmp.eq.s32.totalorder %s30, 1
      %p151 = por %p149, %p150
      %p153 = scmp.ne.s32.totalorder %s138, %s152
      %p154 = scmp.eq.s32.totalorder %s30, 0
      %p155 = por %p153, %p154
      %s156 = ssub.s32 %s31, %s43
      %s157 = ssub.s32 %s32, %s39
      %s158 = sor.u32 %s156, %s157
      %p159 = scmp.eq.s32.totalorder %s158, 0
      %s161 = sadd.s32 %s160, 1
      %s162 = scalar_select %p159, %s160, %s161
      %p165 = pneg %p159
      %p166 = scmp.eq.s32.totalorder %s24, 1
      %p167 = por %p165, %p166
      %p168 = scmp.ne.s32.totalorder %s160, %s163
      %p169 = scmp.eq.s32.totalorder %s24, 0
      %p170 = por %p168, %p169
      %p171 = scmp.ne.s32.totalorder %s160, %s163
      %p172 = scmp.eq.s32.totalorder %s29, 1
      %p173 = por %p171, %p172
      %p174 = scmp.ne.s32.totalorder %s163, %s164
      %p175 = scmp.eq.s32.totalorder %s29, 0
      %p176 = por %p174, %p175
      %p177 = scmp.ne.s32.totalorder %s163, %s164
      %p178 = scmp.eq.s32.totalorder %s30, 1
      %p179 = por %p177, %p178
      %p181 = scmp.ne.s32.totalorder %s164, %s180
      %p182 = scmp.eq.s32.totalorder %s30, 0
      %p183 = por %p181, %p182
      %s184 = ssub.s32 %s31, %s43
      %s185 = ssub.s32 %s32, %s39
      %s186 = sor.u32 %s184, %s185
      %p187 = scmp.eq.s32.totalorder %s186, 0
      %s189 = sadd.s32 %s188, 1
      %s190 = scalar_select %p187, %s188, %s189
      %p193 = pneg %p187
      %p194 = scmp.eq.s32.totalorder %s24, 1
      %p195 = por %p193, %p194
      %p196 = scmp.ne.s32.totalorder %s188, %s191
      %p197 = scmp.eq.s32.totalorder %s24, 0
      %p198 = por %p196, %p197
      %p199 = scmp.ne.s32.totalorder %s188, %s191
      %p200 = scmp.eq.s32.totalorder %s29, 1
      %p201 = por %p199, %p200
      %p202 = scmp.ne.s32.totalorder %s191, %s192
      %p203 = scmp.eq.s32.totalorder %s29, 0
      %p204 = por %p202, %p203
      %p205 = scmp.ne.s32.totalorder %s191, %s192
      %p206 = scmp.eq.s32.totalorder %s30, 1
      %p207 = por %p205, %p206
      %p209 = scmp.ne.s32.totalorder %s192, %s208
      %p210 = scmp.eq.s32.totalorder %s30, 0
      %p211 = por %p209, %p210
      %s212 = ssub.s32 %s31, %s43
      %s213 = ssub.s32 %s32, %s39
      %s214 = sor.u32 %s212, %s213
      %p215 = scmp.eq.s32.totalorder %s214, 0
      %s217 = sadd.s32 %s216, 1
      %s218 = scalar_select %p215, %s216, %s217
      %p221 = pneg %p215
      %p222 = scmp.eq.s32.totalorder %s24, 1
      %p223 = por %p221, %p222
      %p224 = scmp.ne.s32.totalorder %s216, %s219
      %p225 = scmp.eq.s32.totalorder %s24, 0
      %p226 = por %p224, %p225
      %p227 = scmp.ne.s32.totalorder %s216, %s219
      %p228 = scmp.eq.s32.totalorder %s29, 1
      %p229 = por %p227, %p228
      %p230 = scmp.ne.s32.totalorder %s219, %s220
      %p231 = scmp.eq.s32.totalorder %s29, 0
      %p232 = por %p230, %p231
      %p233 = scmp.ne.s32.totalorder %s219, %s220
      %p234 = scmp.eq.s32.totalorder %s30, 1
      %p235 = por %p233, %p234
      %p237 = scmp.ne.s32.totalorder %s220, %s236
      %p238 = scmp.eq.s32.totalorder %s30, 0
      %p239 = por %p237, %p238
      %p240 = scmp.le.s32.totalorder 1, %s24
      %p241 = scmp.lt.s32.totalorder %s24, 3
      %p242 = pnand %p240, %p241
      %p243 = pneg %p242
      // Predicated region
      $region9: #{tpu_custom_call.1} parent=5 // pred_check
        _
      $region10: #{tpu_custom_call.1} parent=5 // pred_check_branch
        %245 = sbr.rel (%p242) target = $region12
      $region11: #{tpu_custom_call.1} parent=5 // pred_region
        %s246 = ssub.s32 %s24, 1
        // Predicated region
        $region13: #{tpu_custom_call.1} parent=11 // pred_check
          %p247 = pneg %p85
        $region14: #{tpu_custom_call.1} parent=11 // pred_check_branch
          %249 = sbr.rel (%p247) target = $region16
        $region15: #{tpu_custom_call.1} parent=11 // pred_region
          %251 = vsyncadd [#allocation6], 0
          %s253 = sshll.u32 %s1, 4
          %s254 = int_to_ptr.hbm [resolvable:$true] %s253
          %s255 = sshll.u32 [#allocation5], 4
          %s256 = int_to_ptr.vmem [resolvable:$true] %s255
          %258 = dma.hbm_to_vmem [thread:$0]  %s254, 16, %s256, [#allocation6]
        $region16: #{tpu_custom_call.1} parent=11 // pred_fallthru
          _
        // Predicated region
        $region17: #{tpu_custom_call.1} parent=11 // pred_check
          %p259 = pneg %p106
        $region18: #{tpu_custom_call.1} parent=11 // pred_check_branch
          %261 = sbr.rel (%p259) target = $region20
        $region19: #{tpu_custom_call.1} parent=11 // pred_region
          _
        $region20: #{tpu_custom_call.1} parent=11 // pred_fallthru
          _
        // Predicated region
        $region21: #{tpu_custom_call.1} parent=11 // pred_check
          %p262 = pneg %p127
        $region22: #{tpu_custom_call.1} parent=11 // pred_check_branch
          %264 = sbr.rel (%p262) target = $region24
        $region23: #{tpu_custom_call.1} parent=11 // pred_region
          %266 = vsyncadd [#allocation6], 0
          %s267 = sshll.u32 %s3, 4
          %s268 = int_to_ptr.hbm [resolvable:$true] %s267
          %s269 = sshll.u32 [#allocation7], 4
          %s270 = int_to_ptr.vmem [resolvable:$true] %s269
          %275 = dma.hbm_to_vmem [thread:$0]  %s268, 256, %s270, [#allocation6], 64, 64, 4
        $region24: #{tpu_custom_call.1} parent=11 // pred_fallthru
          _
        // Predicated region
        $region25: #{tpu_custom_call.1} parent=11 // pred_check
          %p276 = pneg %p148
        $region26: #{tpu_custom_call.1} parent=11 // pred_check_branch
          %278 = sbr.rel (%p276) target = $region28
        $region27: #{tpu_custom_call.1} parent=11 // pred_region
          _
        $region28: #{tpu_custom_call.1} parent=11 // pred_fallthru
          _
      $region12: #{tpu_custom_call.1} parent=5 // pred_fallthru
        _
      %p279 = scmp.lt.s32.totalorder %s24, 2
      // Predicated region
      $region29: #{tpu_custom_call.1} parent=5 // pred_check
        %p280 = pneg %p279
      $region30: #{tpu_custom_call.1} parent=5 // pred_check_branch
        %282 = sbr.rel (%p280) target = $region32
      $region31: #{tpu_custom_call.1} parent=5 // pred_region
        // Predicated region
        $region33: #{tpu_custom_call.1} parent=31 // pred_check
          %p283 = pneg %p58
        $region34: #{tpu_custom_call.1} parent=31 // pred_check_branch
          %285 = sbr.rel (%p283) target = $region36
        $region35: #{tpu_custom_call.1} parent=31 // pred_region
          %s286 = sand.u32 %s48, 1
          %s287 = scalar_lea.sflag [#allocation3], %s286
          %s288 = sand.u32 %s48, 1
          %s289 = smul.addr %s288, 4
          %s290 = scalar_lea.vmem [#allocation2], %s289
          %292 = vsyncadd %s287, 0
          %s293 = sadd.s32 %s32, %s31
          %s294 = smul.addr %s293, 4
          %s295 = scalar_lea.hbm %s0, %s294
          %s297 = sshll.u32 %s295, 4
          %s298 = int_to_ptr.hbm [resolvable:$true] %s297
          %s299 = sshll.u32 %s290, 4
          %s300 = int_to_ptr.vmem [resolvable:$true] %s299
          %302 = dma.hbm_to_vmem [thread:$0]  %s298, 64, %s300, %s287
        $region36: #{tpu_custom_call.1} parent=31 // pred_fallthru
          _
      $region32: #{tpu_custom_call.1} parent=5 // pred_fallthru
        _
      %p303 = scmp.le.s32.totalorder 1, %s24
      %p304 = scmp.lt.s32.totalorder %s24, 3
      %p305 = pnand %p303, %p304
      %p306 = pneg %p305
      // Predicated region
      $region37: #{tpu_custom_call.1} parent=5 // pred_check
        _
      $region38: #{tpu_custom_call.1} parent=5 // pred_check_branch
        %308 = sbr.rel (%p305) target = $region40
      $region39: #{tpu_custom_call.1} parent=5 // pred_region
        %s309 = ssub.s32 %s24, 1
        %s310 = sand.u32 %s51, 1
        %s311 = scalar_lea.sflag [#allocation3], %s310
        %s312 = sand.u32 %s51, 1
        %s313 = smul.addr %s312, 4
        %s314 = scalar_lea.vmem [#allocation2], %s313
        // Predicated region
        $region41: #{tpu_custom_call.1} parent=39 // pred_check
          %p315 = pneg %p64
        $region42: #{tpu_custom_call.1} parent=39 // pred_check_branch
          %317 = sbr.rel (%p315) target = $region44
        $region43: #{tpu_custom_call.1} parent=39 // pred_region
          %319 = dma.done %s311, 64
        $region44: #{tpu_custom_call.1} parent=39 // pred_fallthru
          _
        // Predicated region
        $region45: #{tpu_custom_call.1} parent=39 // pred_check
          %p320 = pneg %p85
        $region46: #{tpu_custom_call.1} parent=39 // pred_check_branch
          %322 = sbr.rel (%p320) target = $region48
        $region47: #{tpu_custom_call.1} parent=39 // pred_region
          %324 = dma.done [#allocation6], 16
        $region48: #{tpu_custom_call.1} parent=39 // pred_fallthru
          _
        // Predicated region
        $region49: #{tpu_custom_call.1} parent=39 // pred_check
          %p325 = pneg %p127
        $region50: #{tpu_custom_call.1} parent=39 // pred_check_branch
          %327 = sbr.rel (%p325) target = $region52
        $region51: #{tpu_custom_call.1} parent=39 // pred_region
          %329 = dma.done [#allocation6], 256
        $region52: #{tpu_custom_call.1} parent=39 // pred_fallthru
          _
        %s330 = sand.u32 %s51, 1
        %s331 = scalar_lea.sflag [#allocation3], %s330
        %s332 = sand.u32 %s51, 1
        %s333 = smul.addr %s332, 4
        %s334 = scalar_lea.vmem [#allocation2], %s333
        %p335 = pneg %p64
        %p336 = pneg %p61
        %p337 = pneg %p85
        %p338 = pneg %p82
        %p339 = pneg %p106
        %p340 = pneg %p103
        %p341 = pneg %p127
        %p342 = pneg %p124
        %p343 = pneg %p148
        %p344 = pneg %p145
        %p345 = pneg %p176
        %p346 = pneg %p173
        %s347 = sand.u32 %s163, 1
        %s348 = scalar_lea.sflag [#allocation4], %s347
        %s349 = sand.u32 %s163, 1
        %s350 = smul.addr %s349, 16
        %s351 = scalar_lea.vmem [#allocation8], %s350
        %p352 = pneg %p204
        %p353 = pneg %p201
        %s354 = sand.u32 %s29, 1
        %s355 = scalar_lea.sflag [#allocation10], %s354
        %s356 = sand.u32 %s191, 1
        %s357 = smul.addr %s356, 16
        %s358 = scalar_lea.vmem [#allocation9], %s357
        %p359 = pneg %p232
        %p360 = pneg %p229
        %s361 = sand.u32 %s29, 1
        %s362 = scalar_lea.sflag [#allocation10], %s361
        %s363 = sand.u32 %s219, 1
        %s364 = smul.addr %s363, 16
        %s365 = scalar_lea.vmem [#allocation11], %s364
        %v367 = vld [vmem:[%s314] sm:$0xf]
        %v368 = vunpack.c.l.bf16 %v367
        %v369 = vld [vmem:[#allocation5] sm:$0x1]
        %v370 = vld [vmem:[%s2] sm:$0x1]
        %vm371 = vcmask 261120
        %v372 = vsel %vm371, %v368, 0.0
        %373 = vadd.xlane.f32.xlu0 %v372
        %v374 = vpop.xlane.xlu0 %373
        %v375 = vrcp.pop 32.0
        %v376 = vmul.f32 32.0, %v375
        %v377 = vsub.f32 1.0, %v376
        %v378 = vmul.f32 %v375, %v377
        %v379 = vadd.f32 %v375, %v378
        %vm380 = vweird.f32 %v375
        %v381 = vsel %vm380, %v375, %v379
        %v382 = vmul.f32 %v374, %v381
        %v383 = vsub.f32 %v368, %v382
        %v384 = vmul.f32 %v383, %v383
        %v385 = vsel %vm371, %v384, 0.0
        %386 = vadd.xlane.f32.xlu0 %v385
        %v387 = vpop.xlane.xlu0 %386
        %v388 = vmul.f32 %v387, %v381
        %v389 = vadd.f32 %v388, 1e-05
        %v390 = vrsqrt.pop %v389
        %v391 = vmul.f32 %v390, %v389
        %v392 = vmul.f32 %v391, %v390
        %v393 = vmul.f32 0.5, %v392
        %v394 = vsub.f32 1.5, %v393
        %v395 = vmul.f32 %v390, %v394
        %vm396 = vweird.f32 %v389
        %vm397 = vweird.f32 %v390
        %vm398 = vmor %vm396, %vm397
        %v399 = vsel %vm398, %v390, %v395
        %v400 = vmul.f32 %v383, %v399
        %v402 = vperm.slane %v369, 0
        %v404 = vmul.f32 %v400, %v402
        %v406 = vperm.slane %v370, 0
        %v408 = vadd.f32 %v404, %v406
        %v409 = vpack.c.bf16 %v408, %v408
        %v410 = vld [vmem:[#allocation7] sm:$0xf]
        %v411 = vld [vmem:[#allocation7 + $0x4] sm:$0xf]
        %v412 = vld [vmem:[#allocation7 + $0x8] sm:$0xf]
        %v413 = vld [vmem:[#allocation7 + $0xc] sm:$0xf]
        %v414 = vld [vmem:[%s4] sm:$0x1]
        %v416 = vperm.slane %v414, 0
        %v422 = vunpack.c.l.b16 %v410
        %v423 = vunpack.c.l.b16 %v411
        %v424 = vunpack.c.l.b16 %v412
        %v425 = vunpack.c.l.b16 %v413
        %v426 = vpack.c.b16 %v423, %v422
        %v427 = vpack.c.b16 %v425, %v424
        %v431 = vsel %vm371, %v409, 0
        %433 = vmatpush.bf16.msra.mxu0 0
        %434 = vmatpush.bf16.msra.mxu0 0
        %435 = vmatpush.bf16.msra.mxu0 0
        %436 = vmatpush.bf16.msra.mxu0 0
        %437 = vmatpush.bf16.msra.mxu0 0
        %438 = vmatpush.bf16.msra.mxu0 0
        %439 = vmatpush.bf16.msra.mxu0 %v427
        %440 = vmatpush.bf16.msra.mxu0 %v426
        %441 = vmatmul.bf16.gmra.mxu0 %v431
        %v442 = vpop.f32.mrf.mxu0
        %v443 = vadd.f32 %v416, %v442
        %v444 = vpop.f32.mrf.mxu0
        %445 = vdwg.mxu0
        %v446 = vpack.c.bf16 %v443, %v443
        %vm447 = vcmask 60416
        %448 = vst.msk [vmem:[%s351] sm:$0xf] %vm447, %v446
        %450 = vrot.lane.b32.xlu0 %v446, 96
        %v451 = vpop.permute.xlu0 %450
        %453 = vst.msk [vmem:[%s358] sm:$0xf] %vm447, %v451
        %454 = vrot.lane.b32.xlu0 %v446, 64
        %v455 = vpop.permute.xlu0 %454
        %457 = vst.msk [vmem:[%s365] sm:$0xf] %vm447, %v455
        %458 = vrot.lane.b32.xlu0 %v446, 120
        %v459 = vpop.permute.xlu0 %458
        %s461 = scalar_lea.vmem %s351, 4 [#allocation8]
        %462 = vst.msk [vmem:[%s461] sm:$0xf] %vm447, %v459
        %463 = vrot.lane.b32.xlu0 %v446, 88
        %v464 = vpop.permute.xlu0 %463
        %s466 = scalar_lea.vmem %s358, 4 [#allocation9]
        %467 = vst.msk [vmem:[%s466] sm:$0xf] %vm447, %v464
        %468 = vrot.lane.b32.xlu0 %v446, 56
        %v469 = vpop.permute.xlu0 %468
        %s471 = scalar_lea.vmem %s365, 4 [#allocation11]
        %472 = vst.msk [vmem:[%s471] sm:$0xf] %vm447, %v469
        %473 = vrot.lane.b32.xlu0 %v446, 112
        %v474 = vpop.permute.xlu0 %473
        %s476 = scalar_lea.vmem %s351, 8 [#allocation8]
        %477 = vst.msk [vmem:[%s476] sm:$0xf] %vm447, %v474
        %478 = vrot.lane.b32.xlu0 %v446, 80
        %v479 = vpop.permute.xlu0 %478
        %s481 = scalar_lea.vmem %s358, 8 [#allocation9]
        %482 = vst.msk [vmem:[%s481] sm:$0xf] %vm447, %v479
        %483 = vrot.lane.b32.xlu0 %v446, 48
        %v484 = vpop.permute.xlu0 %483
        %s486 = scalar_lea.vmem %s365, 8 [#allocation11]
        %487 = vst.msk [vmem:[%s486] sm:$0xf] %vm447, %v484
        %488 = vrot.lane.b32.xlu0 %v446, 104
        %v489 = vpop.permute.xlu0 %488
        %s491 = scalar_lea.vmem %s351, 12 [#allocation8]
        %492 = vst.msk [vmem:[%s491] sm:$0xf] %vm447, %v489
        %493 = vrot.lane.b32.xlu0 %v446, 72
        %v494 = vpop.permute.xlu0 %493
        %s496 = scalar_lea.vmem %s358, 12 [#allocation9]
        %497 = vst.msk [vmem:[%s496] sm:$0xf] %vm447, %v494
        %498 = vrot.lane.b32.xlu0 %v446, 40
        %v499 = vpop.permute.xlu0 %498
        %s501 = scalar_lea.vmem %s365, 12 [#allocation11]
        %502 = vst.msk [vmem:[%s501] sm:$0xf] %vm447, %v499
        %s503 = sand.u32 %s163, 1
        %s504 = scalar_lea.sflag [#allocation4], %s503
        %s505 = sand.u32 %s163, 1
        %s506 = smul.addr %s505, 16
        %s507 = scalar_lea.vmem [#allocation8], %s506
        %s508 = sand.u32 %s29, 1
        %s509 = scalar_lea.sflag [#allocation10], %s508
        %s510 = sand.u32 %s191, 1
        %s511 = smul.addr %s510, 16
        %s512 = scalar_lea.vmem [#allocation9], %s511
        %s513 = sand.u32 %s29, 1
        %s514 = scalar_lea.sflag [#allocation10], %s513
        %s515 = sand.u32 %s219, 1
        %s516 = smul.addr %s515, 16
        %s517 = scalar_lea.vmem [#allocation11], %s516
        // Predicated region
        $region53: #{tpu_custom_call.1} parent=39 // pred_check
          %p518 = pneg %p173
        $region54: #{tpu_custom_call.1} parent=39 // pred_check_branch
          %520 = sbr.rel (%p518) target = $region56
        $region55: #{tpu_custom_call.1} parent=39 // pred_region
          %522 = vsyncadd %s504, 0
          %s523 = smul.addr %s33, 4
          %s524 = sadd.s32 %s34, %s523
          %s525 = smul.addr %s524, 4
          %s526 = scalar_lea.hbm %s5, %s525
          %s527 = sshll.u32 %s507, 4
          %s528 = int_to_ptr.vmem [resolvable:$true] %s527
          %s529 = sshll.u32 %s526, 4
          %s530 = int_to_ptr.hbm [resolvable:$true] %s529
          %535 = dma.vmem_to_hbm [thread:$0]  %s528, 256, %s530, %s504, 64, 64, 4
        $region56: #{tpu_custom_call.1} parent=39 // pred_fallthru
          _
        // Predicated region
        $region57: #{tpu_custom_call.1} parent=39 // pred_check
          %p536 = pneg %p201
        $region58: #{tpu_custom_call.1} parent=39 // pred_check_branch
          %538 = sbr.rel (%p536) target = $region60
        $region59: #{tpu_custom_call.1} parent=39 // pred_region
          %540 = vsyncadd %s509, 0
          %s541 = smul.addr %s33, 4
          %s542 = sadd.s32 %s34, %s541
          %s543 = smul.addr %s542, 4
          %s544 = scalar_lea.hbm %s6, %s543
          %s545 = sshll.u32 %s512, 4
          %s546 = int_to_ptr.vmem [resolvable:$true] %s545
          %s547 = sshll.u32 %s544, 4
          %s548 = int_to_ptr.hbm [resolvable:$true] %s547
          %553 = dma.vmem_to_hbm [thread:$0]  %s546, 256, %s548, %s509, 64, 64, 4
        $region60: #{tpu_custom_call.1} parent=39 // pred_fallthru
          _
        // Predicated region
        $region61: #{tpu_custom_call.1} parent=39 // pred_check
          %p554 = pneg %p229
        $region62: #{tpu_custom_call.1} parent=39 // pred_check_branch
          %556 = sbr.rel (%p554) target = $region64
        $region63: #{tpu_custom_call.1} parent=39 // pred_region
          %558 = vsyncadd %s514, 0
          %s559 = smul.addr %s33, 4
          %s560 = sadd.s32 %s34, %s559
          %s561 = smul.addr %s560, 4
          %s562 = scalar_lea.hbm %s7, %s561
          %s563 = sshll.u32 %s517, 4
          %s564 = int_to_ptr.vmem [resolvable:$true] %s563
          %s565 = sshll.u32 %s562, 4
          %s566 = int_to_ptr.hbm [resolvable:$true] %s565
          %571 = dma.vmem_to_hbm [thread:$0]  %s564, 256, %s566, %s514, 64, 64, 4
        $region64: #{tpu_custom_call.1} parent=39 // pred_fallthru
          _
      $region40: #{tpu_custom_call.1} parent=5 // pred_fallthru
        _
      %p572 = scmp.le.s32.totalorder 2, %s24
      // Predicated region
      $region65: #{tpu_custom_call.1} parent=5 // pred_check
        %p573 = pneg %p572
      $region66: #{tpu_custom_call.1} parent=5 // pred_check_branch
        %575 = sbr.rel (%p573) target = $region68
      $region67: #{tpu_custom_call.1} parent=5 // pred_region
        %s576 = ssub.s32 %s24, 2
        // Predicated region
        $region69: #{tpu_custom_call.1} parent=67 // pred_check
          %p577 = pneg %p179
        $region70: #{tpu_custom_call.1} parent=67 // pred_check_branch
          %579 = sbr.rel (%p577) target = $region72
        $region71: #{tpu_custom_call.1} parent=67 // pred_region
          %s580 = sand.u32 %s164, 1
          %s581 = scalar_lea.sflag [#allocation4], %s580
          %s582 = sand.u32 %s164, 1
          %s583 = smul.addr %s582, 16
          %s584 = scalar_lea.vmem [#allocation8], %s583
          %586 = dma.done %s581, 256
        $region72: #{tpu_custom_call.1} parent=67 // pred_fallthru
          _
        // Predicated region
        $region73: #{tpu_custom_call.1} parent=67 // pred_check
          %p587 = pneg %p207
        $region74: #{tpu_custom_call.1} parent=67 // pred_check_branch
          %589 = sbr.rel (%p587) target = $region76
        $region75: #{tpu_custom_call.1} parent=67 // pred_region
          %s590 = sand.u32 %s30, 1
          %s591 = scalar_lea.sflag [#allocation10], %s590
          %s592 = sand.u32 %s192, 1
          %s593 = smul.addr %s592, 16
          %s594 = scalar_lea.vmem [#allocation9], %s593
          %596 = dma.done %s591, 256
        $region76: #{tpu_custom_call.1} parent=67 // pred_fallthru
          _
        // Predicated region
        $region77: #{tpu_custom_call.1} parent=67 // pred_check
          %p597 = pneg %p235
        $region78: #{tpu_custom_call.1} parent=67 // pred_check_branch
          %599 = sbr.rel (%p597) target = $region80
        $region79: #{tpu_custom_call.1} parent=67 // pred_region
          %s600 = sand.u32 %s30, 1
          %s601 = scalar_lea.sflag [#allocation10], %s600
          %s602 = sand.u32 %s220, 1
          %s603 = smul.addr %s602, 16
          %s604 = scalar_lea.vmem [#allocation11], %s603
          %606 = dma.done %s601, 256
        $region80: #{tpu_custom_call.1} parent=67 // pred_fallthru
          _
      $region68: #{tpu_custom_call.1} parent=5 // pred_fallthru
        _
    $region6: #{tpu_custom_call.1} parent=1 // loop_footer
      %s28 = sadd.s32 1, %s24
    $region7: #{tpu_custom_call.1} parent=1 // loop_footer_branch
      %23 = sbr.rel target = $region3
    $region8: #{tpu_custom_call.1} parent=1 // loop_exit
      _
    %607 = vsyncpa [#allocation3], 1
    %s608 = scalar_lea.sflag [#allocation3], 1
    %609 = vsyncpa %s608, 1
    %610 = vsyncpa [#allocation6], 1
    %611 = vsyncpa [#allocation4], 1
    %s612 = scalar_lea.sflag [#allocation4], 1
    %613 = vsyncpa %s612, 1
    %614 = vsyncpa [#allocation10], 1
    %s615 = scalar_lea.sflag [#allocation10], 1
    %616 = vsyncpa %s615, 1

</llo_original>
